<compile_context>
chip_gen: v5e
topology: v5e:2x2
jax: 0.10.0
libtpu: 0.0.40
codegen_flags: <defaults>
</compile_context>

<pallas_src>
import math
import numpy as np
import jax
import jax.numpy as jnp
from jax import lax
from jax.experimental import pallas as pl
from jax.experimental.pallas import tpu as pltpu


# ---------------------------------------------------------------------------
# Static region geometry (replicates cirtorch LF.rmac), grouped per level so the
# kernel can share row strips between regions of the same level.
# ---------------------------------------------------------------------------
def rmac_region_levels(H, W, L):
    """Returns [(wl, row_offsets, col_offsets), ...]; regions of a level are the
    cartesian product rows x cols (duplicates kept, exactly like the reference)."""
    ovr = 0.4
    steps = np.array([2, 3, 4, 5, 6, 7], dtype=np.float64)
    w = min(W, H)
    b = (max(H, W) - w) / (steps - 1)
    idx = int(np.argmin(np.abs(((w ** 2 - w * b) / w ** 2) - ovr)))
    Wd = idx + 1 if H < W else 0
    Hd = idx + 1 if H > W else 0

    levels = []
    for l in range(1, L + 1):
        wl = math.floor(2 * w / (l + 1))
        if wl == 0:
            continue
        wl2 = math.floor(wl / 2 - 1)
        b = 0.0 if (l + Wd == 1) else (W - wl) / (l + Wd - 1)
        cenW = np.floor(wl2 + np.arange(l - 1 + Wd + 1) * b) - wl2
        b = 0.0 if (l + Hd == 1) else (H - wl) / (l + Hd - 1)
        cenH = np.floor(wl2 + np.arange(l - 1 + Hd + 1) * b) - wl2
        rows = [int(i) for i in cenH.tolist()]
        cols = [int(j) for j in cenW.tolist()]
        for i0 in rows:
            assert 0 <= i0 and i0 + wl <= H, (i0, wl, H)
        for j0 in cols:
            assert 0 <= j0 and j0 + wl <= W, (j0, wl, W)
        levels.append((int(wl), rows, cols))
    return levels


def _num_regions(levels):
    return 1 + sum(len(r) * len(c) for (_, r, c) in levels)   # +1 = full-image MAC


def _neg_identity(dtype):
    """Identity element for max that is valid for non-inf-capable dtypes too."""
    d = jnp.dtype(dtype)
    if jnp.issubdtype(d, jnp.floating):
        return float(jnp.finfo(d).min)
    return int(jnp.iinfo(d).min)


def _vmem_capacity_bytes():
    """Physical per-core VMEM; conservative (v7x) default if query unavailable."""
    if hasattr(pltpu, "get_tpu_info"):
        try:
            cap = int(pltpu.get_tpu_info().vmem_capacity_bytes)
            if cap > 0:
                return cap
        except Exception:   # capability probe only; compile errors are NOT caught here
            pass
    return 64 << 20


def _pick_c_block(C, H, W, itemsize, n_batch, target_bytes, min_steps=4):
    """Lane-aligned channel block dividing C: largest that fits the byte target,
    shrunk (down to 128) until the total grid has >= min_steps steps when possible."""
    cands = sorted({cb for cb in (1024, 512, 384, 256, 128) if C % cb == 0},
                   reverse=True)
    if not cands:
        cands = [C]                 # C < 128 or not lane-divisible: single (padded) block
    fitting = [cb for cb in cands if H * W * cb * itemsize <= target_bytes]
    pool = fitting if fitting else [cands[-1]]
    for cb in pool:                 # pool is descending: first cb with enough steps wins
        if n_batch * (C // cb) >= min_steps:
            return cb
    return pool[-1]                 # maximize step count if min_steps is unreachable


# ---------------------------------------------------------------------------
# Stage 1: per-region spatial max pooling
# ---------------------------------------------------------------------------
def make_pool_kernel(H, W, levels, n_regions, r_pad):
    n_full_chunks = H // 8

    def kernel(x_ref, o_ref):
        # x_ref: (1, H, W, C_BLK) input block; o_ref: (1, R_pad, C_BLK) pooled dtype.
        c_blk = o_ref.shape[-1]
        out_dtype = o_ref.dtype
        neg = jnp.asarray(_neg_identity(x_ref.dtype), dtype=x_ref.dtype)

        # One pass over the block: 8-row (sublane-tile) partial maxes, shared by
        # every level's row strips and by the global MAC.
        chunks = [jnp.max(x_ref[0, k * 8:(k + 1) * 8, :, :], axis=0)
                  for k in range(n_full_chunks)]

        strip_cache = {}

        def row_strip_max(i0, wl):
            """max over rows [i0, i0+wl) -> (W, C_BLK), built from 8-row chunks."""
            key = (i0, wl)
            if key in strip_cache:
                return strip_cache[key]
            i1 = i0 + wl
            c0 = (i0 + 7) // 8          # first fully-covered chunk
            c1 = i1 // 8                # one past last fully-covered chunk
            if c1 <= c0:
                s = jnp.max(x_ref[0, i0:i1, :, :], axis=0)
            else:
                parts = [chunks[k] for k in range(c0, c1)]
                if i0 < c0 * 8:         # head edge rows (< 8)
                    parts.append(jnp.max(x_ref[0, i0:c0 * 8, :, :], axis=0))
                if i1 > c1 * 8:         # tail edge rows (< 8)
                    parts.append(jnp.max(x_ref[0, c1 * 8:i1, :, :], axis=0))
                s = parts[0]
                for p in parts[1:]:
                    s = jnp.maximum(s, p)
            strip_cache[key] = s
            return s

        rows_out = []

        # Region row 0: global MAC over the whole (H, W) map.
        g = row_strip_max(0, H)
        rows_out.append(jnp.max(g, axis=0, keepdims=True).astype(out_dtype))

        for (wl, rows, cols) in levels:
            # Hoist per-column-offset masks / aligned windows out of the row loop.
            col_info = {}
            for j0 in cols:
                if j0 in col_info:
                    continue
                j1 = j0 + wl
                if j0 % 8 == 0 and (j1 % 8 == 0 or j1 == W):
                    col_info[j0] = (j0, j1, None)          # exactly sublane-aligned
                else:
                    a0 = (j0 // 8) * 8                     # aligned bounding window
                    a1 = min(((j1 + 7) // 8) * 8, W)
                    ids = lax.broadcasted_iota(jnp.int32, (a1 - a0, 1), 0) + a0
                    col_info[j0] = (a0, a1, (ids >= j0) & (ids < j1))

            pooled_cache = {}
            for i0 in rows:
                strip = row_strip_max(i0, wl)
                for j0 in cols:
                    key = (i0, j0)
                    if key not in pooled_cache:
                        a0, a1, m = col_info[j0]
                        win = strip if (a0 == 0 and a1 == W) else strip[a0:a1, :]
                        if m is not None:
                            win = jnp.where(m, win, neg)
                        pooled_cache[key] = jnp.max(
                            win, axis=0, keepdims=True).astype(out_dtype)
                    rows_out.append(pooled_cache[key])     # duplicates kept (ref semantics)

        # Pad to the sublane-aligned row count and issue one full-tile store.
        if n_regions < r_pad:
            rows_out.append(jnp.zeros((r_pad - n_regions, c_blk), dtype=out_dtype))
        o_ref[0, :, :] = jnp.concatenate(rows_out, axis=0)

    return kernel


# ---------------------------------------------------------------------------
# Stage 2: per-region channel L2 normalization + sum over regions (exact math)
# ---------------------------------------------------------------------------
def make_norm_sum_kernel(eps):
    def kernel(p_ref, o_ref):
        p = p_ref[0, :, :].astype(jnp.float32)              # (R_pad, C)
        ssq = jnp.sum(p * p, axis=1, keepdims=True)         # (R_pad, 1)
        inv = 1.0 / (jnp.sqrt(ssq) + eps)                   # exact; stage 2 is tiny
        # Padding rows are all-zero -> contribute 0 to the sum.
        o_ref[0, :, :] = jnp.sum(p * inv, axis=0, keepdims=True)

    return kernel


# ---------------------------------------------------------------------------
# Wrappers
# ---------------------------------------------------------------------------
def rmac_pallas_nhwc(x_nhwc, L=3, eps=1e-6):
    """RMAC on an NHWC feature map. Returns (N, 1, C) float32."""
    N, H, W, C = x_nhwc.shape
    levels = rmac_region_levels(H, W, L)
    n_regions = _num_regions(levels)
    r_pad = max(8, ((n_regions + 7) // 8) * 8)              # sublane-aligned rows

    in_dtype = jnp.dtype(x_nhwc.dtype)
    itemsize = int(in_dtype.itemsize)
    # Maxima of bf16/f16/f32 inputs are exactly representable in the same dtype.
    if jnp.issubdtype(in_dtype, jnp.floating) and itemsize >= 2:
        pooled_dtype = in_dtype
    else:
        pooled_dtype = jnp.dtype(jnp.float32)

    vmem_cap = _vmem_capacity_bytes()
    vmem_budget = (vmem_cap * 3) // 4                       # headroom for compiler scratch
    target_bytes = (16 << 20) if vmem_cap >= (128 << 20) else (8 << 20)

    c_blk = _pick_c_block(C, H, W, itemsize, N, target_bytes)
    n_cblk = max(1, C // c_blk)

    in_block_bytes = H * W * c_blk * itemsize
    out_block_bytes = r_pad * c_blk * int(jnp.dtype(pooled_dtype).itemsize)
    needed = 2 * in_block_bytes + 2 * out_block_bytes + (2 << 20)
    if needed > vmem_budget:
        # TODO(synk): add an H-band tiled pooling variant (per-band partial maxes
        # combined in scratch) for feature maps whose minimum channel block does
        # not fit double-buffered in VMEM (e.g. very large H*W on v7x).
        raise ValueError(
            f"RMAC pool block ({in_block_bytes} B with c_blk={c_blk}) does not fit "
            f"double-buffered in the VMEM budget ({vmem_budget} B).")
    vmem_limit = int(min(max(needed, 16 << 20), vmem_budget))

    pool_kernel = make_pool_kernel(H, W, levels, n_regions, r_pad)
    pooled = pl.pallas_call(
        pool_kernel,
        out_shape=jax.ShapeDtypeStruct((N, r_pad, C), pooled_dtype),
        grid=(N, n_cblk),
        in_specs=[pl.BlockSpec((1, H, W, c_blk), lambda n, c: (n, 0, 0, c))],
        out_specs=pl.BlockSpec((1, r_pad, c_blk), lambda n, c: (n, 0, c)),
        compiler_params=pltpu.CompilerParams(
            dimension_semantics=("parallel", "parallel"),
            vmem_limit_bytes=vmem_limit),
    )(x_nhwc)

    norm_kernel = make_norm_sum_kernel(float(eps))
    out = pl.pallas_call(
        norm_kernel,
        out_shape=jax.ShapeDtypeStruct((N, 1, C), jnp.float32),
        grid=(N,),
        in_specs=[pl.BlockSpec((1, r_pad, C), lambda n: (n, 0, 0))],
        out_specs=pl.BlockSpec((1, 1, C), lambda n: (n, 0, 0)),
        compiler_params=pltpu.CompilerParams(dimension_semantics=("parallel",)),
    )(pooled)
    return out                                               # (N, 1, C) f32


def rmac_pallas(x_nchw, L=3, eps=1e-6):
    """PyTorch-shaped entry: NCHW in, (N, C, 1, 1) float32 out."""
    N, C, H, W = x_nchw.shape
    # TODO(synk): if the producer can emit NHWC (channels-last) directly, call
    # rmac_pallas_nhwc and skip this transpose HBM round trip (largest e2e win).
    x = jnp.transpose(x_nchw, (0, 2, 3, 1))                  # NHWC, native dtype
    out = rmac_pallas_nhwc(x, L=L, eps=eps)                  # (N, 1, C) f32
    return out.reshape(N, C)[:, :, None, None]               # keep f32 (matches reference)


# ---------------------------------------------------------------------------
# Pure-JAX reference (cirtorch LF.rmac semantics, NCHW)
# ---------------------------------------------------------------------------
def rmac_reference(x_nchw, L=3, eps=1e-6):
    N, C, H, W = x_nchw.shape
    levels = rmac_region_levels(H, W, L)
    x = x_nchw.astype(jnp.float32)

    def pooled(r):
        v = jnp.max(r, axis=(2, 3), keepdims=True)
        nrm = jnp.sqrt(jnp.sum(v * v, axis=1, keepdims=True)) + eps
        return v / nrm

    v = pooled(x)
    for (wl, rows, cols) in levels:
        for i0 in rows:
            for j0 in cols:
                v = v + pooled(x[:, :, i0:i0 + wl, j0:j0 + wl])
    return v


if __name__ == "__main__":
    # Small deterministic example: batch=2, channels=32, spatial 16x16 (NCHW).
    key = jax.random.PRNGKey(0)
    x = jax.random.normal(key, (2, 32, 16, 16), dtype=jnp.float32)

    out = rmac_pallas(x, L=3, eps=1e-6)
    out = jax.block_until_ready(out)

    ref = rmac_reference(x, L=3, eps=1e-6)
    assert out.shape == (2, 32, 1, 1), out.shape
    assert out.dtype == jnp.float32, out.dtype
    err = float(np.max(np.abs(np.asarray(out) - np.asarray(ref))))
    assert np.allclose(np.asarray(out), np.asarray(ref), rtol=1e-4, atol=1e-5), err
    print("KERNEL_OK")
</pallas_src>

<mosaic_0001>
module attributes {stable_mosaic.version = 11 : i64} {
  func.func @kernel(%arg0: i32, %arg1: i32, %arg2: memref<1x16x16x32xf32, #tpu.memory_space<vmem>>, %arg3: memref<1x16x32xf32, #tpu.memory_space<vmem>>) attributes {dimension_semantics = [#tpu.dimension_semantics<parallel>, #tpu.dimension_semantics<parallel>], iteration_bounds = array<i64: 2, 1>, scalar_prefetch = 0 : i64, scratch_operands = 0 : i64, tpu.core_type = #tpu.core_type<tc>, window_params = [{transform_indices = @transform_0, window_bounds = array<i64: 1, 16, 16, 32>}, {transform_indices = @transform_1, window_bounds = array<i64: 1, 16, 32>}]} {
    %c0 = arith.constant 0 : index
    %c0_0 = arith.constant 0 : index
    %c0_1 = arith.constant 0 : index
    %c0_2 = arith.constant 0 : index
    %0 = vector.load %arg2[%c0, %c0_0, %c0_1, %c0_2] : memref<1x16x16x32xf32, #tpu.memory_space<vmem>>, vector<1x8x16x32xf32>
    %1 = vector.shape_cast %0 : vector<1x8x16x32xf32> to vector<8x16x32xf32>
    %cst = arith.constant dense<0xFF800000> : vector<16x32xf32>
    %2 = vector.multi_reduction <maximumf>, %1, %cst [0] : vector<8x16x32xf32> to vector<16x32xf32>
    %c0_3 = arith.constant 0 : index
    %c8 = arith.constant 8 : index
    %c0_4 = arith.constant 0 : index
    %c0_5 = arith.constant 0 : index
    %3 = vector.load %arg2[%c0_3, %c8, %c0_4, %c0_5] : memref<1x16x16x32xf32, #tpu.memory_space<vmem>>, vector<1x8x16x32xf32>
    %4 = vector.shape_cast %3 : vector<1x8x16x32xf32> to vector<8x16x32xf32>
    %cst_6 = arith.constant dense<0xFF800000> : vector<16x32xf32>
    %5 = vector.multi_reduction <maximumf>, %4, %cst_6 [0] : vector<8x16x32xf32> to vector<16x32xf32>
    %6 = arith.maximumf %2, %5 : vector<16x32xf32>
    %cst_7 = arith.constant dense<0xFF800000> : vector<32xf32>
    %7 = vector.multi_reduction <maximumf>, %6, %cst_7 [0] : vector<16x32xf32> to vector<32xf32>
    %8 = vector.shape_cast %7 : vector<32xf32> to vector<1x32xf32>
    %cst_8 = arith.constant dense<0xFF800000> : vector<32xf32>
    %9 = vector.multi_reduction <maximumf>, %6, %cst_8 [0] : vector<16x32xf32> to vector<32xf32>
    %10 = vector.shape_cast %9 : vector<32xf32> to vector<1x32xf32>
    %11 = tpu.iota {dimensions = array<i32: 0>} : vector<16x1xi32>
    %c0_i32 = arith.constant 0 : i32
    %12 = vector.broadcast %c0_i32 : i32 to vector<16x1xi32>
    %13 = arith.addi %11, %12 : vector<16x1xi32>
    %c0_i32_9 = arith.constant 0 : i32
    %14 = vector.broadcast %c0_i32_9 : i32 to vector<16x1xi32>
    %15 = arith.cmpi sge, %13, %14 : vector<16x1xi32>
    %c10_i32 = arith.constant 10 : i32
    %16 = vector.broadcast %c10_i32 : i32 to vector<16x1xi32>
    %17 = arith.cmpi slt, %13, %16 : vector<16x1xi32>
    %18 = arith.andi %15, %17 : vector<16x1xi1>
    %19 = tpu.iota {dimensions = array<i32: 0>} : vector<16x1xi32>
    %c0_i32_10 = arith.constant 0 : i32
    %20 = vector.broadcast %c0_i32_10 : i32 to vector<16x1xi32>
    %21 = arith.addi %19, %20 : vector<16x1xi32>
    %c6_i32 = arith.constant 6 : i32
    %22 = vector.broadcast %c6_i32 : i32 to vector<16x1xi32>
    %23 = arith.cmpi sge, %21, %22 : vector<16x1xi32>
    %c16_i32 = arith.constant 16 : i32
    %24 = vector.broadcast %c16_i32 : i32 to vector<16x1xi32>
    %25 = arith.cmpi slt, %21, %24 : vector<16x1xi32>
    %26 = arith.andi %23, %25 : vector<16x1xi1>
    %c0_11 = arith.constant 0 : index
    %c8_12 = arith.constant 8 : index
    %c0_13 = arith.constant 0 : index
    %c0_14 = arith.constant 0 : index
    %27 = vector.load %arg2[%c0_11, %c8_12, %c0_13, %c0_14] : memref<1x16x16x32xf32, #tpu.memory_space<vmem>>, vector<1x2x16x32xf32>
    %28 = vector.shape_cast %27 : vector<1x2x16x32xf32> to vector<2x16x32xf32>
    %cst_15 = arith.constant dense<0xFF800000> : vector<16x32xf32>
    %29 = vector.multi_reduction <maximumf>, %28, %cst_15 [0] : vector<2x16x32xf32> to vector<16x32xf32>
    %30 = arith.maximumf %2, %29 : vector<16x32xf32>
    %cst_16 = arith.constant -3.40282347E+38 : f32
    %31 = vector.shape_cast %18 : vector<16x1xi1> to vector<16x1xi1>
    %32 = vector.broadcast %31 : vector<16x1xi1> to vector<16x32xi1>
    %33 = vector.broadcast %cst_16 : f32 to vector<16x32xf32>
    %34 = arith.select %32, %30, %33 : vector<16x32xi1>, vector<16x32xf32>
    %cst_17 = arith.constant dense<0xFF800000> : vector<32xf32>
    %35 = vector.multi_reduction <maximumf>, %34, %cst_17 [0] : vector<16x32xf32> to vector<32xf32>
    %36 = vector.shape_cast %35 : vector<32xf32> to vector<1x32xf32>
    %cst_18 = arith.constant -3.40282347E+38 : f32
    %37 = vector.shape_cast %26 : vector<16x1xi1> to vector<16x1xi1>
    %38 = vector.broadcast %37 : vector<16x1xi1> to vector<16x32xi1>
    %39 = vector.broadcast %cst_18 : f32 to vector<16x32xf32>
    %40 = arith.select %38, %30, %39 : vector<16x32xi1>, vector<16x32xf32>
    %cst_19 = arith.constant dense<0xFF800000> : vector<32xf32>
    %41 = vector.multi_reduction <maximumf>, %40, %cst_19 [0] : vector<16x32xf32> to vector<32xf32>
    %42 = vector.shape_cast %41 : vector<32xf32> to vector<1x32xf32>
    %c0_20 = arith.constant 0 : index
    %c6 = arith.constant 6 : index
    %c0_21 = arith.constant 0 : index
    %c0_22 = arith.constant 0 : index
    %43 = vector.load %arg2[%c0_20, %c6, %c0_21, %c0_22] : memref<1x16x16x32xf32, #tpu.memory_space<vmem>>, vector<1x2x16x32xf32>
    %44 = vector.shape_cast %43 : vector<1x2x16x32xf32> to vector<2x16x32xf32>
    %cst_23 = arith.constant dense<0xFF800000> : vector<16x32xf32>
    %45 = vector.multi_reduction <maximumf>, %44, %cst_23 [0] : vector<2x16x32xf32> to vector<16x32xf32>
    %46 = arith.maximumf %5, %45 : vector<16x32xf32>
    %cst_24 = arith.constant -3.40282347E+38 : f32
    %47 = vector.shape_cast %18 : vector<16x1xi1> to vector<16x1xi1>
    %48 = vector.broadcast %47 : vector<16x1xi1> to vector<16x32xi1>
    %49 = vector.broadcast %cst_24 : f32 to vector<16x32xf32>
    %50 = arith.select %48, %46, %49 : vector<16x32xi1>, vector<16x32xf32>
    %cst_25 = arith.constant dense<0xFF800000> : vector<32xf32>
    %51 = vector.multi_reduction <maximumf>, %50, %cst_25 [0] : vector<16x32xf32> to vector<32xf32>
    %52 = vector.shape_cast %51 : vector<32xf32> to vector<1x32xf32>
    %cst_26 = arith.constant -3.40282347E+38 : f32
    %53 = vector.shape_cast %26 : vector<16x1xi1> to vector<16x1xi1>
    %54 = vector.broadcast %53 : vector<16x1xi1> to vector<16x32xi1>
    %55 = vector.broadcast %cst_26 : f32 to vector<16x32xf32>
    %56 = arith.select %54, %46, %55 : vector<16x32xi1>, vector<16x32xf32>
    %cst_27 = arith.constant dense<0xFF800000> : vector<32xf32>
    %57 = vector.multi_reduction <maximumf>, %56, %cst_27 [0] : vector<16x32xf32> to vector<32xf32>
    %58 = vector.shape_cast %57 : vector<32xf32> to vector<1x32xf32>
    %59 = tpu.iota {dimensions = array<i32: 0>} : vector<16x1xi32>
    %c0_i32_28 = arith.constant 0 : i32
    %60 = vector.broadcast %c0_i32_28 : i32 to vector<16x1xi32>
    %61 = arith.addi %59, %60 : vector<16x1xi32>
    %c4_i32 = arith.constant 4 : i32
    %62 = vector.broadcast %c4_i32 : i32 to vector<16x1xi32>
    %63 = arith.cmpi sge, %61, %62 : vector<16x1xi32>
    %c12_i32 = arith.constant 12 : i32
    %64 = vector.broadcast %c12_i32 : i32 to vector<16x1xi32>
    %65 = arith.cmpi slt, %61, %64 : vector<16x1xi32>
    %66 = arith.andi %63, %65 : vector<16x1xi1>
    %67 = vector.extract_strided_slice %2 {offsets = [0, 0], sizes = [8, 32], strides = [1, 1]} : vector<16x32xf32> to vector<8x32xf32>
    %cst_29 = arith.constant dense<0xFF800000> : vector<32xf32>
    %68 = vector.multi_reduction <maximumf>, %67, %cst_29 [0] : vector<8x32xf32> to vector<32xf32>
    %69 = vector.shape_cast %68 : vector<32xf32> to vector<1x32xf32>
    %cst_30 = arith.constant -3.40282347E+38 : f32
    %70 = vector.shape_cast %66 : vector<16x1xi1> to vector<16x1xi1>
    %71 = vector.broadcast %70 : vector<16x1xi1> to vector<16x32xi1>
    %72 = vector.broadcast %cst_30 : f32 to vector<16x32xf32>
    %73 = arith.select %71, %2, %72 : vector<16x32xi1>, vector<16x32xf32>
    %cst_31 = arith.constant dense<0xFF800000> : vector<32xf32>
    %74 = vector.multi_reduction <maximumf>, %73, %cst_31 [0] : vector<16x32xf32> to vector<32xf32>
    %75 = vector.shape_cast %74 : vector<32xf32> to vector<1x32xf32>
    %76 = vector.extract_strided_slice %2 {offsets = [8, 0], sizes = [8, 32], strides = [1, 1]} : vector<16x32xf32> to vector<8x32xf32>
    %cst_32 = arith.constant dense<0xFF800000> : vector<32xf32>
    %77 = vector.multi_reduction <maximumf>, %76, %cst_32 [0] : vector<8x32xf32> to vector<32xf32>
    %78 = vector.shape_cast %77 : vector<32xf32> to vector<1x32xf32>
    %c0_33 = arith.constant 0 : index
    %c4 = arith.constant 4 : index
    %c0_34 = arith.constant 0 : index
    %c0_35 = arith.constant 0 : index
    %79 = vector.load %arg2[%c0_33, %c4, %c0_34, %c0_35] : memref<1x16x16x32xf32, #tpu.memory_space<vmem>>, vector<1x8x16x32xf32>
    %80 = vector.shape_cast %79 : vector<1x8x16x32xf32> to vector<8x16x32xf32>
    %cst_36 = arith.constant dense<0xFF800000> : vector<16x32xf32>
    %81 = vector.multi_reduction <maximumf>, %80, %cst_36 [0] : vector<8x16x32xf32> to vector<16x32xf32>
    %82 = vector.extract_strided_slice %81 {offsets = [0, 0], sizes = [8, 32], strides = [1, 1]} : vector<16x32xf32> to vector<8x32xf32>
    %cst_37 = arith.constant dense<0xFF800000> : vector<32xf32>
    %83 = vector.multi_reduction <maximumf>, %82, %cst_37 [0] : vector<8x32xf32> to vector<32xf32>
    %84 = vector.shape_cast %83 : vector<32xf32> to vector<1x32xf32>
    %cst_38 = arith.constant -3.40282347E+38 : f32
    %85 = vector.shape_cast %66 : vector<16x1xi1> to vector<16x1xi1>
    %86 = vector.broadcast %85 : vector<16x1xi1> to vector<16x32xi1>
    %87 = vector.broadcast %cst_38 : f32 to vector<16x32xf32>
    %88 = arith.select %86, %81, %87 : vector<16x32xi1>, vector<16x32xf32>
    %cst_39 = arith.constant dense<0xFF800000> : vector<32xf32>
    %89 = vector.multi_reduction <maximumf>, %88, %cst_39 [0] : vector<16x32xf32> to vector<32xf32>
    %90 = vector.shape_cast %89 : vector<32xf32> to vector<1x32xf32>
    %91 = vector.extract_strided_slice %81 {offsets = [8, 0], sizes = [8, 32], strides = [1, 1]} : vector<16x32xf32> to vector<8x32xf32>
    %cst_40 = arith.constant dense<0xFF800000> : vector<32xf32>
    %92 = vector.multi_reduction <maximumf>, %91, %cst_40 [0] : vector<8x32xf32> to vector<32xf32>
    %93 = vector.shape_cast %92 : vector<32xf32> to vector<1x32xf32>
    %94 = vector.extract_strided_slice %5 {offsets = [0, 0], sizes = [8, 32], strides = [1, 1]} : vector<16x32xf32> to vector<8x32xf32>
    %cst_41 = arith.constant dense<0xFF800000> : vector<32xf32>
    %95 = vector.multi_reduction <maximumf>, %94, %cst_41 [0] : vector<8x32xf32> to vector<32xf32>
    %96 = vector.shape_cast %95 : vector<32xf32> to vector<1x32xf32>
    %cst_42 = arith.constant -3.40282347E+38 : f32
    %97 = vector.shape_cast %66 : vector<16x1xi1> to vector<16x1xi1>
    %98 = vector.broadcast %97 : vector<16x1xi1> to vector<16x32xi1>
    %99 = vector.broadcast %cst_42 : f32 to vector<16x32xf32>
    %100 = arith.select %98, %5, %99 : vector<16x32xi1>, vector<16x32xf32>
    %cst_43 = arith.constant dense<0xFF800000> : vector<32xf32>
    %101 = vector.multi_reduction <maximumf>, %100, %cst_43 [0] : vector<16x32xf32> to vector<32xf32>
    %102 = vector.shape_cast %101 : vector<32xf32> to vector<1x32xf32>
    %103 = vector.extract_strided_slice %5 {offsets = [8, 0], sizes = [8, 32], strides = [1, 1]} : vector<16x32xf32> to vector<8x32xf32>
    %cst_44 = arith.constant dense<0xFF800000> : vector<32xf32>
    %104 = vector.multi_reduction <maximumf>, %103, %cst_44 [0] : vector<8x32xf32> to vector<32xf32>
    %105 = vector.shape_cast %104 : vector<32xf32> to vector<1x32xf32>
    %cst_45 = arith.constant 0.000000e+00 : f32
    %106 = vector.broadcast %cst_45 : f32 to vector<1x32xf32>
    %107 = tpu.concatenate %8, %10, %36, %42, %52, %58, %69, %75, %78, %84, %90, %93, %96, %102, %105, %106 in 0 : vector<1x32xf32>, vector<1x32xf32>, vector<1x32xf32>, vector<1x32xf32>, vector<1x32xf32>, vector<1x32xf32>, vector<1x32xf32>, vector<1x32xf32>, vector<1x32xf32>, vector<1x32xf32>, vector<1x32xf32>, vector<1x32xf32>, vector<1x32xf32>, vector<1x32xf32>, vector<1x32xf32>, vector<1x32xf32> -> vector<16x32xf32>
    %c0_46 = arith.constant 0 : index
    %c0_47 = arith.constant 0 : index
    %c0_48 = arith.constant 0 : index
    %108 = vector.load %arg3[%c0_46, %c0_47, %c0_48] : memref<1x16x32xf32, #tpu.memory_space<vmem>>, vector<1x16x32xf32>
    %109 = vector.shape_cast %108 : vector<1x16x32xf32> to vector<16x32xf32>
    %110 = vector.shape_cast %107 : vector<16x32xf32> to vector<1x16x32xf32>
    tpu.vector_store %arg3[%c0_46, %c0_47, %c0_48], %110 {strides = array<i32>} : memref<1x16x32xf32, #tpu.memory_space<vmem>>, vector<1x16x32xf32>,
    return
  }
  func.func @transform_0(%arg0: i32, %arg1: i32) -> (i32, i32, i32, i32) {
    %c0_i32 = arith.constant 0 : i32
    %c0_i32_0 = arith.constant 0 : i32
    %c0_i32_1 = arith.constant 0 : i32
    return %arg0, %c0_i32, %c0_i32_0, %arg1 : i32, i32, i32, i32
  }
  func.func @transform_1(%arg0: i32, %arg1: i32) -> (i32, i32, i32) {
    %c0_i32 = arith.constant 0 : i32
    %c0_i32_0 = arith.constant 0 : i32
    return %arg0, %c0_i32, %arg1 : i32, i32, i32
  }
}

</mosaic_0001>

<llo_original>
// kernel: tpu_custom_call.1
$region0: #{tpu_custom_call.1}
  #allocation0 [shape = 'u32[]', space=smem, size = 0x4, offset = 0x4, fixed_abs, tag = 'smem constant byte address 0x4 - core index']
  #allocation1 [shape = 'u32[72,128]{1,0:T(1,128)}', space=vmem, size = 0x9000, scoped, tag = 'internal scratch']
  %s0 = inlined_call_operand.hbm [shape: f32[2,16,16,32], index: 0, kind: input, shape index: {}]
  %s1 = inlined_call_operand.hbm [shape: f32[2,16,32], index: 1, kind: output, shape index: {}]
  %s2 = sld [smem:[#allocation0]]
  $region41: #{tpu_custom_call.1} parent=0
    _
  %s4 = ssub.s32 1, %s2
  %s5 = scalar_select 0, %s4, %s2
  $region1: #{tpu_custom_call.1} parent=0
    #allocation2 [shape = 'u8[262144]{0}', space=vmem, size = 0x40000, scoped, tag = 'input window, operand 0']
    #allocation3 [shape = 's32[2]{0}', space=sflag, size = 0x8, scoped, tag = 'scoped memory for tpu_custom_call.1']
    #allocation4 [shape = 's32[2]{0}', space=sflag, size = 0x8, scoped, tag = 'scoped memory for tpu_custom_call.1']
    #allocation5 [shape = 'u8[16384]{0}', space=vmem, size = 0x4000, scoped, tag = 'output window, operand 0']
    %6 = vsyncpa [#allocation3], 0
    %s7 = scalar_lea.sflag [#allocation3], 1
    %8 = vsyncpa %s7, 0
    %9 = vsyncpa [#allocation4], 0
    %s10 = scalar_lea.sflag [#allocation4], 1
    %11 = vsyncpa %s10, 0
    loop: start=0, step=1, limit=4
    $region2: #{tpu_custom_call.1} parent=1 // loop_pre_header
      _
    $region3: #{tpu_custom_call.1} parent=1 // loop_header
      %s13 = sphi 0, %s17
      %p14 = scmp.ge.s32.totalorder %s13, 4
      %s20 = sphi 0, %s32
      %s21 = sphi 0, %s28
      %s22 = sphi 0, %s20
      %s23 = sphi 0, %s21
      %s24 = sphi 0, %s22
      %s25 = sphi 0, %s23
      %s37 = sphi 0, %s39
      %s40 = sphi 0, %s37
      %s41 = sphi 0, %s40
      %s57 = sphi 0, %s41
      %s65 = sphi 0, %s67
      %s68 = sphi 0, %s65
      %s69 = sphi 0, %s68
      %s85 = sphi 0, %s69
    $region4: #{tpu_custom_call.1} parent=1 // loop_header_branch
      %16 = sbr.rel (%p14) target = $region8
    $region5: #{tpu_custom_call.1} parent=1 // loop_body
      %s18 = ssub.s32 %s13, 1
      %s19 = ssub.s32 %s13, 2
      %s26 = sadd.s32 1, %s21
      %p27 = scmp.ge.s32.totalorder %s26, 1
      %s28 = scalar_select %p27, 0, %s26
      %s29 = sadd.s32 1, %s20
      %s30 = scalar_select %p27, %s29, %s20
      %p31 = scmp.ge.s32.totalorder %s30, 2
      %s32 = scalar_select %p31, 0, %s30
      %s33 = ssub.s32 %s20, %s32
      %s34 = ssub.s32 %s21, %s28
      %s35 = sor.u32 %s33, %s34
      %p36 = scmp.eq.s32.totalorder %s35, 0
      %s38 = sadd.s32 %s37, 1
      %s39 = scalar_select %p36, %s37, %s38
      %p42 = pneg %p36
      %p43 = scmp.eq.s32.totalorder %s13, 1
      %p44 = por %p42, %p43
      %p45 = scmp.ne.s32.totalorder %s37, %s40
      %p46 = scmp.eq.s32.totalorder %s13, 0
      %p47 = por %p45, %p46
      %p48 = scmp.ne.s32.totalorder %s37, %s40
      %p49 = scmp.eq.s32.totalorder %s18, 1
      %p50 = por %p48, %p49
      %p51 = scmp.ne.s32.totalorder %s40, %s41
      %p52 = scmp.eq.s32.totalorder %s18, 0
      %p53 = por %p51, %p52
      %p54 = scmp.ne.s32.totalorder %s40, %s41
      %p55 = scmp.eq.s32.totalorder %s19, 1
      %p56 = por %p54, %p55
      %p58 = scmp.ne.s32.totalorder %s41, %s57
      %p59 = scmp.eq.s32.totalorder %s19, 0
      %p60 = por %p58, %p59
      %s61 = ssub.s32 %s20, %s32
      %s62 = ssub.s32 %s21, %s28
      %s63 = sor.u32 %s61, %s62
      %p64 = scmp.eq.s32.totalorder %s63, 0
      %s66 = sadd.s32 %s65, 1
      %s67 = scalar_select %p64, %s65, %s66
      %p70 = pneg %p64
      %p71 = scmp.eq.s32.totalorder %s13, 1
      %p72 = por %p70, %p71
      %p73 = scmp.ne.s32.totalorder %s65, %s68
      %p74 = scmp.eq.s32.totalorder %s13, 0
      %p75 = por %p73, %p74
      %p76 = scmp.ne.s32.totalorder %s65, %s68
      %p77 = scmp.eq.s32.totalorder %s18, 1
      %p78 = por %p76, %p77
      %p79 = scmp.ne.s32.totalorder %s68, %s69
      %p80 = scmp.eq.s32.totalorder %s18, 0
      %p81 = por %p79, %p80
      %p82 = scmp.ne.s32.totalorder %s68, %s69
      %p83 = scmp.eq.s32.totalorder %s19, 1
      %p84 = por %p82, %p83
      %p86 = scmp.ne.s32.totalorder %s69, %s85
      %p87 = scmp.eq.s32.totalorder %s19, 0
      %p88 = por %p86, %p87
      %p89 = scmp.le.s32.totalorder 1, %s13
      %p90 = scmp.lt.s32.totalorder %s13, 3
      %p91 = pnand %p89, %p90
      %p92 = pneg %p91
      // Predicated region
      $region9: #{tpu_custom_call.1} parent=5 // pred_check
        _
      $region10: #{tpu_custom_call.1} parent=5 // pred_check_branch
        %94 = sbr.rel (%p91) target = $region12
      $region11: #{tpu_custom_call.1} parent=5 // pred_region
        %s95 = ssub.s32 %s13, 1
      $region12: #{tpu_custom_call.1} parent=5 // pred_fallthru
        _
      %p96 = scmp.lt.s32.totalorder %s13, 2
      // Predicated region
      $region13: #{tpu_custom_call.1} parent=5 // pred_check
        %p97 = pneg %p96
      $region14: #{tpu_custom_call.1} parent=5 // pred_check_branch
        %99 = sbr.rel (%p97) target = $region16
      $region15: #{tpu_custom_call.1} parent=5 // pred_region
        // Predicated region
        $region17: #{tpu_custom_call.1} parent=15 // pred_check
          %p100 = pneg %p47
        $region18: #{tpu_custom_call.1} parent=15 // pred_check_branch
          %102 = sbr.rel (%p100) target = $region20
        $region19: #{tpu_custom_call.1} parent=15 // pred_region
          %s103 = sand.u32 %s37, 1
          %s104 = scalar_lea.sflag [#allocation3], %s103
          %s105 = sand.u32 %s37, 1
          %s106 = smul.addr %s105, 256
          %s107 = scalar_lea.vmem [#allocation2], %s106
          %109 = vsyncadd %s104, 0
          %s110 = smul.addr %s20, 32
          %s111 = sadd.s32 %s21, %s110
          %s112 = smul.addr %s111, 8
          %s113 = scalar_lea.hbm %s0, %s112
          %s114 = sshll.u32 %s113, 4
          %s115 = int_to_ptr.hbm [resolvable:$true] %s114
          %s116 = sshll.u32 %s107, 4
          %s117 = int_to_ptr.vmem [resolvable:$true] %s116
          %122 = dma.hbm_to_vmem [thread:$0]  %s115, 4096, %s117, %s104, 128, 128, 8
        $region20: #{tpu_custom_call.1} parent=15 // pred_fallthru
          _
      $region16: #{tpu_custom_call.1} parent=5 // pred_fallthru
        _
      %p123 = scmp.le.s32.totalorder 1, %s13
      %p124 = scmp.lt.s32.totalorder %s13, 3
      %p125 = pnand %p123, %p124
      %p126 = pneg %p125
      // Predicated region
      $region21: #{tpu_custom_call.1} parent=5 // pred_check
        _
      $region22: #{tpu_custom_call.1} parent=5 // pred_check_branch
        %128 = sbr.rel (%p125) target = $region24
      $region23: #{tpu_custom_call.1} parent=5 // pred_region
        %s129 = ssub.s32 %s13, 1
        %s130 = sand.u32 %s40, 1
        %s131 = scalar_lea.sflag [#allocation3], %s130
        %s132 = sand.u32 %s40, 1
        %s133 = smul.addr %s132, 256
        %s134 = scalar_lea.vmem [#allocation2], %s133
        // Predicated region
        $region25: #{tpu_custom_call.1} parent=23 // pred_check
          %p135 = pneg %p53
        $region26: #{tpu_custom_call.1} parent=23 // pred_check_branch
          %137 = sbr.rel (%p135) target = $region28
        $region27: #{tpu_custom_call.1} parent=23 // pred_region
          %139 = dma.done %s131, 4096
        $region28: #{tpu_custom_call.1} parent=23 // pred_fallthru
          _
        %s140 = sand.u32 %s40, 1
        %s141 = scalar_lea.sflag [#allocation3], %s140
        %s142 = sand.u32 %s40, 1
        %s143 = smul.addr %s142, 256
        %s144 = scalar_lea.vmem [#allocation2], %s143
        %p145 = pneg %p53
        %p146 = pneg %p50
        %p147 = pneg %p81
        %p148 = pneg %p78
        %s149 = sand.u32 %s68, 1
        %s150 = scalar_lea.sflag [#allocation4], %s149
        %s151 = sand.u32 %s68, 1
        %s152 = smul.addr %s151, 16
        %s153 = scalar_lea.vmem [#allocation5], %s152
        %v154 = vld [vmem:[%s134] sm:$0xff]
        %v155 = vld [vmem:[%s134 + $0x8] sm:$0xff]
        %v156 = vld [vmem:[%s134 + $0x10] sm:$0xff]
        %v157 = vld [vmem:[%s134 + $0x18] sm:$0xff]
        %v158 = vld [vmem:[%s134 + $0x20] sm:$0xff]
        %v159 = vld [vmem:[%s134 + $0x28] sm:$0xff]
        %v160 = vld [vmem:[%s134 + $0x30] sm:$0xff]
        %v161 = vld [vmem:[%s134 + $0x38] sm:$0xff]
        %v162 = vld [vmem:[%s134 + $0x40] sm:$0xff]
        %v163 = vld [vmem:[%s134 + $0x48] sm:$0xff]
        %v164 = vld [vmem:[%s134 + $0x50] sm:$0xff]
        %v165 = vld [vmem:[%s134 + $0x58] sm:$0xff]
        %v166 = vld [vmem:[%s134 + $0x60] sm:$0xff]
        %v167 = vld [vmem:[%s134 + $0x68] sm:$0xff]
        %v168 = vld [vmem:[%s134 + $0x70] sm:$0xff]
        %v169 = vld [vmem:[%s134 + $0x78] sm:$0xff]
        %vm170 = vcmask 261120
        %v171 = vsel %vm170, %v154, -inf
        %v172 = vsel %vm170, %v156, -inf
        %v173 = vsel %vm170, %v158, -inf
        %v174 = vmax.f32 %v171, %v173
        %v175 = vsel %vm170, %v160, -inf
        %v176 = vmax.f32 %v172, %v175
        %v177 = vsel %vm170, %v162, -inf
        %v178 = vmax.f32 %v174, %v177
        %v179 = vsel %vm170, %v164, -inf
        %v180 = vmax.f32 %v176, %v179
        %v181 = vsel %vm170, %v166, -inf
        %v182 = vmax.f32 %v178, %v181
        %v183 = vsel %vm170, %v168, -inf
        %v184 = vmax.f32 %v180, %v183
        %v185 = vmax.f32 %v182, %v184
        %v186 = vsel %vm170, %v155, -inf
        %v187 = vsel %vm170, %v157, -inf
        %v188 = vsel %vm170, %v159, -inf
        %v189 = vmax.f32 %v186, %v188
        %v190 = vsel %vm170, %v161, -inf
        %v191 = vmax.f32 %v187, %v190
        %v192 = vsel %vm170, %v163, -inf
        %v193 = vmax.f32 %v189, %v192
        %v194 = vsel %vm170, %v165, -inf
        %v195 = vmax.f32 %v191, %v194
        %v196 = vsel %vm170, %v167, -inf
        %v197 = vmax.f32 %v193, %v196
        %v198 = vsel %vm170, %v169, -inf
        %v199 = vmax.f32 %v195, %v198
        %v200 = vmax.f32 %v197, %v199
        %s201 = scalar_lea.vmem %s134, 128 [#allocation2]
        %v202 = vld [vmem:[%s201] sm:$0xff]
        %v203 = vld [vmem:[%s201 + $0x8] sm:$0xff]
        %v204 = vld [vmem:[%s201 + $0x10] sm:$0xff]
        %v205 = vld [vmem:[%s201 + $0x18] sm:$0xff]
        %v206 = vld [vmem:[%s201 + $0x20] sm:$0xff]
        %v207 = vld [vmem:[%s201 + $0x28] sm:$0xff]
        %v208 = vld [vmem:[%s201 + $0x30] sm:$0xff]
        %v209 = vld [vmem:[%s201 + $0x38] sm:$0xff]
        %v210 = vld [vmem:[%s201 + $0x40] sm:$0xff]
        %v211 = vld [vmem:[%s201 + $0x48] sm:$0xff]
        %v212 = vld [vmem:[%s201 + $0x50] sm:$0xff]
        %v213 = vld [vmem:[%s201 + $0x58] sm:$0xff]
        %v214 = vld [vmem:[%s201 + $0x60] sm:$0xff]
        %v215 = vld [vmem:[%s201 + $0x68] sm:$0xff]
        %v216 = vld [vmem:[%s201 + $0x70] sm:$0xff]
        %v217 = vld [vmem:[%s201 + $0x78] sm:$0xff]
        %v218 = vsel %vm170, %v202, -inf
        %v219 = vsel %vm170, %v204, -inf
        %v220 = vsel %vm170, %v206, -inf
        %v221 = vmax.f32 %v218, %v220
        %v222 = vsel %vm170, %v208, -inf
        %v223 = vmax.f32 %v219, %v222
        %v224 = vsel %vm170, %v210, -inf
        %v225 = vmax.f32 %v221, %v224
        %v226 = vsel %vm170, %v212, -inf
        %v227 = vmax.f32 %v223, %v226
        %v228 = vsel %vm170, %v214, -inf
        %v229 = vmax.f32 %v225, %v228
        %v230 = vsel %vm170, %v216, -inf
        %v231 = vmax.f32 %v227, %v230
        %v232 = vmax.f32 %v229, %v231
        %v233 = vsel %vm170, %v203, -inf
        %v234 = vsel %vm170, %v205, -inf
        %v235 = vsel %vm170, %v207, -inf
        %v236 = vmax.f32 %v233, %v235
        %v237 = vsel %vm170, %v209, -inf
        %v238 = vmax.f32 %v234, %v237
        %v239 = vsel %vm170, %v211, -inf
        %v240 = vmax.f32 %v236, %v239
        %v241 = vsel %vm170, %v213, -inf
        %v242 = vmax.f32 %v238, %v241
        %v243 = vsel %vm170, %v215, -inf
        %v244 = vmax.f32 %v240, %v243
        %v245 = vsel %vm170, %v217, -inf
        %v246 = vmax.f32 %v242, %v245
        %v247 = vmax.f32 %v244, %v246
        %v248 = vmax.f32 %v185, %v232
        %v249 = vmax.f32 %v200, %v247
        %v250 = vsel %vm170, %v248, -inf
        %v251 = vsel %vm170, %v249, -inf
        %v252 = vmax.f32 %v250, %v251
        %v253 = vrot.slane %v252, 4
        %v254 = vmax.f32 %v252, %v253
        %v255 = vrot.slane %v254, 2
        %v256 = vmax.f32 %v254, %v255
        %v257 = vrot.slane %v256, 1
        %v258 = vmax.f32 %v256, %v257
        %v259 = vlaneseq
        %v260 = vshrl.u32 %v259, 7
        %v261 = vadd.s32 %v260, 8
        %vm262 = vcmp.ge.s32.totalorder %v260, 0
        %vm263 = vcmp.ge.s32.totalorder %v261, 0
        %vm264 = vcmp.lt.s32.totalorder %v260, 10
        %vm265 = vcmp.lt.s32.totalorder %v261, 10
        %vm266 = vmand %vm262, %vm264
        %vm267 = vmand %vm263, %vm265
        %vm268 = vcmp.ge.s32.totalorder %v260, 6
        %vm269 = vcmp.ge.s32.totalorder %v261, 6
        %vm270 = vcmp.lt.s32.totalorder %v260, 16
        %vm271 = vcmp.lt.s32.totalorder %v261, 16
        %vm272 = vmand %vm268, %vm270
        %vm273 = vmand %vm269, %vm271
        %v274 = vld [vmem:[%s201] sm:$0xff]
        %v275 = vld [vmem:[%s201 + $0x8] sm:$0xff]
        %v276 = vld [vmem:[%s201 + $0x10] sm:$0xff]
        %v277 = vld [vmem:[%s201 + $0x18] sm:$0xff]
        %v278 = vsel %vm170, %v274, -inf
        %v279 = vsel %vm170, %v276, -inf
        %v280 = vmax.f32 %v278, %v279
        %v281 = vsel %vm170, %v275, -inf
        %v282 = vsel %vm170, %v277, -inf
        %v283 = vmax.f32 %v281, %v282
        %v284 = vmax.f32 %v185, %v280
        %v285 = vmax.f32 %v200, %v283
        %v286 = vsel %vm266, 1, 0
        %v287 = vsel %vm267, 1, 0
        %vm288 = vcmp.eq.s32.totalorder %v286, 1
        %vm289 = vcmp.eq.s32.totalorder %v287, 1
        %v290 = vsel %vm288, %v284, -3.4028235e+38
        %v291 = vsel %vm289, %v285, -3.4028235e+38
        %v292 = vsel %vm170, %v290, -inf
        %v293 = vsel %vm170, %v291, -inf
        %v294 = vmax.f32 %v292, %v293
        %v295 = vrot.slane %v294, 4
        %v296 = vmax.f32 %v294, %v295
        %v297 = vrot.slane %v296, 2
        %v298 = vmax.f32 %v296, %v297
        %v299 = vrot.slane %v298, 1
        %v300 = vmax.f32 %v298, %v299
        %v301 = vsel %vm272, 1, 0
        %v302 = vsel %vm273, 1, 0
        %vm303 = vcmp.eq.s32.totalorder %v301, 1
        %vm304 = vcmp.eq.s32.totalorder %v302, 1
        %v305 = vsel %vm303, %v284, -3.4028235e+38
        %v306 = vsel %vm304, %v285, -3.4028235e+38
        %v307 = vsel %vm170, %v305, -inf
        %v308 = vsel %vm170, %v306, -inf
        %v309 = vmax.f32 %v307, %v308
        %v310 = vrot.slane %v309, 4
        %v311 = vmax.f32 %v309, %v310
        %v312 = vrot.slane %v311, 2
        %v313 = vmax.f32 %v311, %v312
        %v314 = vrot.slane %v313, 1
        %v315 = vmax.f32 %v313, %v314
        %s316 = scalar_lea.vmem %s134, 96 [#allocation2]
        %v317 = vld [vmem:[%s316] sm:$0xff]
        %v318 = vld [vmem:[%s316 + $0x8] sm:$0xff]
        %v319 = vld [vmem:[%s316 + $0x10] sm:$0xff]
        %v320 = vld [vmem:[%s316 + $0x18] sm:$0xff]
        %v321 = vsel %vm170, %v317, -inf
        %v322 = vsel %vm170, %v319, -inf
        %v323 = vmax.f32 %v321, %v322
        %v324 = vsel %vm170, %v318, -inf
        %v325 = vsel %vm170, %v320, -inf
        %v326 = vmax.f32 %v324, %v325
        %v327 = vmax.f32 %v232, %v323
        %v328 = vmax.f32 %v247, %v326
        %v329 = vsel %vm288, %v327, -3.4028235e+38
        %v330 = vsel %vm289, %v328, -3.4028235e+38
        %v331 = vsel %vm170, %v329, -inf
        %v332 = vsel %vm170, %v330, -inf
        %v333 = vmax.f32 %v331, %v332
        %v334 = vrot.slane %v333, 4
        %v335 = vmax.f32 %v333, %v334
        %v336 = vrot.slane %v335, 2
        %v337 = vmax.f32 %v335, %v336
        %v338 = vrot.slane %v337, 1
        %v339 = vmax.f32 %v337, %v338
        %v340 = vsel %vm303, %v327, -3.4028235e+38
        %v341 = vsel %vm304, %v328, -3.4028235e+38
        %v342 = vsel %vm170, %v340, -inf
        %v343 = vsel %vm170, %v341, -inf
        %v344 = vmax.f32 %v342, %v343
        %v345 = vrot.slane %v344, 4
        %v346 = vmax.f32 %v344, %v345
        %v347 = vrot.slane %v346, 2
        %v348 = vmax.f32 %v346, %v347
        %v349 = vrot.slane %v348, 1
        %v350 = vmax.f32 %v348, %v349
        %vm351 = vcmp.ge.s32.totalorder %v260, 4
        %vm352 = vcmp.ge.s32.totalorder %v261, 4
        %vm353 = vcmp.lt.s32.totalorder %v260, 12
        %vm354 = vcmp.lt.s32.totalorder %v261, 12
        %vm355 = vmand %vm351, %vm353
        %vm356 = vmand %vm352, %vm354
        %v357 = vsel %vm170, %v185, -inf
        %v358 = vrot.slane %v357, 4
        %v359 = vmax.f32 %v357, %v358
        %v360 = vrot.slane %v359, 2
        %v361 = vmax.f32 %v359, %v360
        %v362 = vrot.slane %v361, 1
        %v363 = vmax.f32 %v361, %v362
        %v364 = vsel %vm355, 1, 0
        %v365 = vsel %vm356, 1, 0
        %vm366 = vcmp.eq.s32.totalorder %v364, 1
        %vm367 = vcmp.eq.s32.totalorder %v365, 1
        %v368 = vsel %vm366, %v185, -3.4028235e+38
        %v369 = vsel %vm367, %v200, -3.4028235e+38
        %v370 = vsel %vm170, %v368, -inf
        %v371 = vsel %vm170, %v369, -inf
        %v372 = vmax.f32 %v370, %v371
        %v373 = vrot.slane %v372, 4
        %v374 = vmax.f32 %v372, %v373
        %v375 = vrot.slane %v374, 2
        %v376 = vmax.f32 %v374, %v375
        %v377 = vrot.slane %v376, 1
        %v378 = vmax.f32 %v376, %v377
        %v379 = vsel %vm170, %v200, -inf
        %v380 = vrot.slane %v379, 4
        %v381 = vmax.f32 %v379, %v380
        %v382 = vrot.slane %v381, 2
        %v383 = vmax.f32 %v381, %v382
        %v384 = vrot.slane %v383, 1
        %v385 = vmax.f32 %v383, %v384
        %s386 = scalar_lea.vmem %s134, 64 [#allocation2]
        %v387 = vld [vmem:[%s386] sm:$0xff]
        %v388 = vld [vmem:[%s386 + $0x8] sm:$0xff]
        %v389 = vld [vmem:[%s386 + $0x10] sm:$0xff]
        %v390 = vld [vmem:[%s386 + $0x18] sm:$0xff]
        %v391 = vld [vmem:[%s386 + $0x20] sm:$0xff]
        %v392 = vld [vmem:[%s386 + $0x28] sm:$0xff]
        %v393 = vld [vmem:[%s386 + $0x30] sm:$0xff]
        %v394 = vld [vmem:[%s386 + $0x38] sm:$0xff]
        %v395 = vld [vmem:[%s386 + $0x40] sm:$0xff]
        %v396 = vld [vmem:[%s386 + $0x48] sm:$0xff]
        %v397 = vld [vmem:[%s386 + $0x50] sm:$0xff]
        %v398 = vld [vmem:[%s386 + $0x58] sm:$0xff]
        %v399 = vld [vmem:[%s386 + $0x60] sm:$0xff]
        %v400 = vld [vmem:[%s386 + $0x68] sm:$0xff]
        %v401 = vld [vmem:[%s386 + $0x70] sm:$0xff]
        %v402 = vld [vmem:[%s386 + $0x78] sm:$0xff]
        %v403 = vsel %vm170, %v387, -inf
        %v404 = vsel %vm170, %v389, -inf
        %v405 = vsel %vm170, %v391, -inf
        %v406 = vmax.f32 %v403, %v405
        %v407 = vsel %vm170, %v393, -inf
        %v408 = vmax.f32 %v404, %v407
        %v409 = vsel %vm170, %v395, -inf
        %v410 = vmax.f32 %v406, %v409
        %v411 = vsel %vm170, %v397, -inf
        %v412 = vmax.f32 %v408, %v411
        %v413 = vsel %vm170, %v399, -inf
        %v414 = vmax.f32 %v410, %v413
        %v415 = vsel %vm170, %v401, -inf
        %v416 = vmax.f32 %v412, %v415
        %v417 = vmax.f32 %v414, %v416
        %v418 = vsel %vm170, %v388, -inf
        %v419 = vsel %vm170, %v390, -inf
        %v420 = vsel %vm170, %v392, -inf
        %v421 = vmax.f32 %v418, %v420
        %v422 = vsel %vm170, %v394, -inf
        %v423 = vmax.f32 %v419, %v422
        %v424 = vsel %vm170, %v396, -inf
        %v425 = vmax.f32 %v421, %v424
        %v426 = vsel %vm170, %v398, -inf
        %v427 = vmax.f32 %v423, %v426
        %v428 = vsel %vm170, %v400, -inf
        %v429 = vmax.f32 %v425, %v428
        %v430 = vsel %vm170, %v402, -inf
        %v431 = vmax.f32 %v427, %v430
        %v432 = vmax.f32 %v429, %v431
        %v433 = vsel %vm170, %v417, -inf
        %v434 = vrot.slane %v433, 4
        %v435 = vmax.f32 %v433, %v434
        %v436 = vrot.slane %v435, 2
        %v437 = vmax.f32 %v435, %v436
        %v438 = vrot.slane %v437, 1
        %v439 = vmax.f32 %v437, %v438
        %v440 = vsel %vm366, %v417, -3.4028235e+38
        %v441 = vsel %vm367, %v432, -3.4028235e+38
        %v442 = vsel %vm170, %v440, -inf
        %v443 = vsel %vm170, %v441, -inf
        %v444 = vmax.f32 %v442, %v443
        %v445 = vrot.slane %v444, 4
        %v446 = vmax.f32 %v444, %v445
        %v447 = vrot.slane %v446, 2
        %v448 = vmax.f32 %v446, %v447
        %v449 = vrot.slane %v448, 1
        %v450 = vmax.f32 %v448, %v449
        %v451 = vsel %vm170, %v432, -inf
        %v452 = vrot.slane %v451, 4
        %v453 = vmax.f32 %v451, %v452
        %v454 = vrot.slane %v453, 2
        %v455 = vmax.f32 %v453, %v454
        %v456 = vrot.slane %v455, 1
        %v457 = vmax.f32 %v455, %v456
        %v458 = vsel %vm170, %v232, -inf
        %v459 = vrot.slane %v458, 4
        %v460 = vmax.f32 %v458, %v459
        %v461 = vrot.slane %v460, 2
        %v462 = vmax.f32 %v460, %v461
        %v463 = vrot.slane %v462, 1
        %v464 = vmax.f32 %v462, %v463
        %v465 = vsel %vm366, %v232, -3.4028235e+38
        %v466 = vsel %vm367, %v247, -3.4028235e+38
        %v467 = vsel %vm170, %v465, -inf
        %v468 = vsel %vm170, %v466, -inf
        %v469 = vmax.f32 %v467, %v468
        %v470 = vrot.slane %v469, 4
        %v471 = vmax.f32 %v469, %v470
        %v472 = vrot.slane %v471, 2
        %v473 = vmax.f32 %v471, %v472
        %v474 = vrot.slane %v473, 1
        %v475 = vmax.f32 %v473, %v474
        %v476 = vsel %vm170, %v247, -inf
        %v477 = vrot.slane %v476, 4
        %v478 = vmax.f32 %v476, %v477
        %v479 = vrot.slane %v478, 2
        %v480 = vmax.f32 %v478, %v479
        %v481 = vrot.slane %v480, 1
        %v482 = vmax.f32 %v480, %v481
        %vm483 = vcmask 1041408
        %v484 = vsel %vm483, %v258, %v300
        %vm485 = vcmask 1042432
        %v486 = vsel %vm485, %v484, %v315
        %vm487 = vcmask 1043456
        %v488 = vsel %vm487, %v486, %v339
        %vm489 = vcmask 1044480
        %v490 = vsel %vm489, %v488, %v350
        %vm491 = vcmask 1045504
        %v492 = vsel %vm491, %v490, %v363
        %vm493 = vcmask 1046528
        %v494 = vsel %vm493, %v492, %v378
        %vm495 = vcmask 1040384
        %v496 = vsel %vm495, %v385, %v439
        %v497 = vsel %vm483, %v496, %v450
        %v498 = vsel %vm485, %v497, %v457
        %v499 = vsel %vm487, %v498, %v464
        %v500 = vsel %vm489, %v499, %v475
        %v501 = vsel %vm491, %v500, %v482
        %v502 = vsel %vm493, %v501, 0.0
        %503 = vst.msk [vmem:[%s153] sm:$0xff] %vm170, %v494
        %504 = vst.msk [vmem:[%s153 + $0x8] sm:$0xff] %vm170, %v502
        %s505 = sand.u32 %s68, 1
        %s506 = scalar_lea.sflag [#allocation4], %s505
        %s507 = sand.u32 %s68, 1
        %s508 = smul.addr %s507, 16
        %s509 = scalar_lea.vmem [#allocation5], %s508
        // Predicated region
        $region29: #{tpu_custom_call.1} parent=23 // pred_check
          %p510 = pneg %p78
        $region30: #{tpu_custom_call.1} parent=23 // pred_check_branch
          %512 = sbr.rel (%p510) target = $region32
        $region31: #{tpu_custom_call.1} parent=23 // pred_region
          %514 = vsyncadd %s506, 0
          %s515 = smul.addr %s22, 2
          %s516 = sadd.s32 %s23, %s515
          %s517 = smul.addr %s516, 8
          %s518 = scalar_lea.hbm %s1, %s517
          %s519 = sshll.u32 %s509, 4
          %s520 = int_to_ptr.vmem [resolvable:$true] %s519
          %s521 = sshll.u32 %s518, 4
          %s522 = int_to_ptr.hbm [resolvable:$true] %s521
          %527 = dma.vmem_to_hbm [thread:$0]  %s520, 256, %s522, %s506, 128, 128, 8
        $region32: #{tpu_custom_call.1} parent=23 // pred_fallthru
          _
      $region24: #{tpu_custom_call.1} parent=5 // pred_fallthru
        _
      %p528 = scmp.le.s32.totalorder 2, %s13
      // Predicated region
      $region33: #{tpu_custom_call.1} parent=5 // pred_check
        %p529 = pneg %p528
      $region34: #{tpu_custom_call.1} parent=5 // pred_check_branch
        %531 = sbr.rel (%p529) target = $region36
      $region35: #{tpu_custom_call.1} parent=5 // pred_region
        %s532 = ssub.s32 %s13, 2
        // Predicated region
        $region37: #{tpu_custom_call.1} parent=35 // pred_check
          %p533 = pneg %p84
        $region38: #{tpu_custom_call.1} parent=35 // pred_check_branch
          %535 = sbr.rel (%p533) target = $region40
        $region39: #{tpu_custom_call.1} parent=35 // pred_region
          %s536 = sand.u32 %s69, 1
          %s537 = scalar_lea.sflag [#allocation4], %s536
          %s538 = sand.u32 %s69, 1
          %s539 = smul.addr %s538, 16
          %s540 = scalar_lea.vmem [#allocation5], %s539
          %542 = dma.done %s537, 256
        $region40: #{tpu_custom_call.1} parent=35 // pred_fallthru
          _
      $region36: #{tpu_custom_call.1} parent=5 // pred_fallthru
        _
    $region6: #{tpu_custom_call.1} parent=1 // loop_footer
      %s17 = sadd.s32 1, %s13
    $region7: #{tpu_custom_call.1} parent=1 // loop_footer_branch
      %12 = sbr.rel target = $region3
    $region8: #{tpu_custom_call.1} parent=1 // loop_exit
      _
    %543 = vsyncpa [#allocation3], 1
    %s544 = scalar_lea.sflag [#allocation3], 1
    %545 = vsyncpa %s544, 1
    %546 = vsyncpa [#allocation4], 1
    %s547 = scalar_lea.sflag [#allocation4], 1
    %548 = vsyncpa %s547, 1

</llo_original>
